<compile_context>
chip_gen: v7x
topology: tpu7x:2x2x1
jax: 0.10.0
libtpu: 0.0.40
codegen_flags: <defaults>
</compile_context>

<pallas_src>
import functools

import jax
import jax.numpy as jnp
from jax.experimental import pallas as pl
from jax.experimental.pallas import tpu as pltpu


_LANE = 128


def _round_up(x, m):
    return ((x + m - 1) // m) * m


def _cdiv(a, b):
    return (a + b - 1) // b


def _mlp_kernel(x_ref, w1_ref, b1_ref, w2_ref, b2_ref, w3_ref, b3_ref, o_ref):
    """Fused 3-layer MLP on one batch tile (all operands resident in VMEM)."""
    # Cast x to the matmul dtype in-kernel (free VPU filler; avoids a separate
    # wrapper-side cast pass over x in HBM when use_bf16 is enabled).
    x = x_ref[...].astype(w1_ref.dtype)

    # fc1 + ReLU (f32 accumulation regardless of matmul input dtype)
    h1 = jnp.dot(x, w1_ref[...], preferred_element_type=jnp.float32) + b1_ref[...]
    h1 = jnp.maximum(h1, 0.0)

    # fc2 + ReLU
    h2 = (
        jnp.dot(h1.astype(w2_ref.dtype), w2_ref[...],
                preferred_element_type=jnp.float32)
        + b2_ref[...]
    )
    h2 = jnp.maximum(h2, 0.0)

    # fc3 (no activation)
    o_ref[...] = (
        jnp.dot(h2.astype(w3_ref.dtype), w3_ref[...],
                preferred_element_type=jnp.float32)
        + b3_ref[...]
    ).astype(o_ref.dtype)


@functools.partial(jax.jit, static_argnames=("batch_tile", "use_bf16"))
def net_forward(x, w1, b1, w2, b2, w3, b3, *, batch_tile=512, use_bf16=False):
    """x: (B, n_input) f32.  Weights are (in, out); biases are (1, out)."""
    B, n_in = x.shape
    h1_dim = w1.shape[1]
    h2_dim = w2.shape[1]
    n_out = w3.shape[1]

    # ---- lane-pad ONLY the hidden dims (weights/biases are tiny; zero pads
    # are mathematically inert through matmul + bias(0) + ReLU).  x and the
    # output stay unpadded. ----
    h1_p = _round_up(h1_dim, _LANE)     # 50  -> 128
    h2_p = _round_up(h2_dim, _LANE)     # 200 -> 256

    w1p = jnp.pad(w1, ((0, 0), (0, h1_p - h1_dim)))
    b1p = jnp.pad(b1, ((0, 0), (0, h1_p - h1_dim)))
    w2p = jnp.pad(w2, ((0, h1_p - h1_dim), (0, h2_p - h2_dim)))
    b2p = jnp.pad(b2, ((0, 0), (0, h2_p - h2_dim)))
    w3p = jnp.pad(w3, ((0, h2_p - h2_dim), (0, 0)))
    b3p = b3

    if use_bf16:
        # Weights only (~300 KiB total): wrapper cast is negligible.  x is
        # cast inside the kernel; biases stay f32 (added post-accumulation).
        w1p = w1p.astype(jnp.bfloat16)
        w2p = w2p.astype(jnp.bfloat16)
        w3p = w3p.astype(jnp.bfloat16)

    # ---- batch tiling: balanced tiles, ragged final block, no wrapper pad.
    # Guarantee >=2 grid steps when the batch allows it so the "parallel"
    # axis can shard across both TensorCores on v7x. ----
    sub = 16 if use_bf16 else 8          # min sublane tile for the matmul dtype
    if B <= sub:
        tile = B                         # single full-array block (always legal)
    else:
        num_steps = max(_cdiv(B, batch_tile), 2)
        tile = _round_up(_cdiv(B, num_steps), sub)
    grid = (_cdiv(B, tile),)

    # Batch is tiled across the grid; weights/biases are broadcast (constant
    # block index -> DMA'd once, resident across grid steps).
    in_specs = [
        pl.BlockSpec((tile, n_in), lambda i: (i, 0)),   # x tile (unpadded K)
        pl.BlockSpec(w1p.shape, lambda i: (0, 0)),      # W1
        pl.BlockSpec(b1p.shape, lambda i: (0, 0)),      # b1
        pl.BlockSpec(w2p.shape, lambda i: (0, 0)),      # W2
        pl.BlockSpec(b2p.shape, lambda i: (0, 0)),      # b2
        pl.BlockSpec(w3p.shape, lambda i: (0, 0)),      # W3
        pl.BlockSpec(b3p.shape, lambda i: (0, 0)),      # b3
    ]
    out_spec = pl.BlockSpec((tile, n_out), lambda i: (i, 0))

    out = pl.pallas_call(
        _mlp_kernel,
        out_shape=jax.ShapeDtypeStruct((B, n_out), jnp.float32),
        grid=grid,
        in_specs=in_specs,
        out_specs=out_spec,
        compiler_params=pltpu.CompilerParams(
            dimension_semantics=("parallel",),
        ),
    )(x, w1p, b1p, w2p, b2p, w3p, b3p)

    return out


def init_linear(key, fan_in, fan_out):
    """Deterministic init matching PyTorch nn.Linear default:
    U(-1/sqrt(fan_in), 1/sqrt(fan_in)) for weight and bias.
    Returned weight is (fan_in, fan_out) = PyTorch weight transposed."""
    kw, kb = jax.random.split(key)
    bound = 1.0 / jnp.sqrt(jnp.float32(fan_in))
    w = jax.random.uniform(kw, (fan_in, fan_out), jnp.float32, -bound, bound)
    b = jax.random.uniform(kb, (1, fan_out), jnp.float32, -bound, bound)
    return w, b


def reference_forward(x, w1, b1, w2, b2, w3, b3):
    h1 = jnp.maximum(x @ w1 + b1, 0.0)
    h2 = jnp.maximum(h1 @ w2 + b2, 0.0)
    return h2 @ w3 + b3


if __name__ == "__main__":
    n_input, n_output = 32, 16

    key = jax.random.PRNGKey(0)
    k_x, k1, k2, k3, k_x2, k_x3 = jax.random.split(key, 6)

    w1, b1 = init_linear(k1, n_input, 50)
    w2, b2 = init_linear(k2, 50, 200)
    w3, b3 = init_linear(k3, 200, n_output)

    # Small batch: splits into 2 parallel grid steps (v7x megacore path).
    batch = 16
    x = jax.random.normal(k_x, (batch, n_input), jnp.float32)
    out = jax.block_until_ready(net_forward(x, w1, b1, w2, b2, w3, b3))
    ref = reference_forward(x, w1, b1, w2, b2, w3, b3)
    assert out.shape == (batch, n_output)
    assert jnp.allclose(out, ref, atol=1e-4, rtol=1e-4), "mismatch (small batch)"

    # Non-divisible batch -> ragged final block (no wrapper-side padding).
    batch2 = 37
    x2 = jax.random.normal(k_x2, (batch2, n_input), jnp.float32)
    out2 = jax.block_until_ready(
        net_forward(x2, w1, b1, w2, b2, w3, b3, batch_tile=512)
    )
    ref2 = reference_forward(x2, w1, b1, w2, b2, w3, b3)
    assert out2.shape == (batch2, n_output)
    assert jnp.allclose(out2, ref2, atol=1e-4, rtol=1e-4), "mismatch (ragged batch)"

    # bf16 MXU path (f32 accumulation) -- loose tolerance vs. f32 reference.
    batch3 = 64
    x3 = jax.random.normal(k_x3, (batch3, n_input), jnp.float32)
    out3 = jax.block_until_ready(
        net_forward(x3, w1, b1, w2, b2, w3, b3, use_bf16=True)
    )
    ref3 = reference_forward(x3, w1, b1, w2, b2, w3, b3)
    assert out3.shape == (batch3, n_output)
    assert bool(jnp.all(jnp.isfinite(out3)))
    assert jnp.allclose(out3, ref3, atol=5e-2, rtol=5e-2), "mismatch (bf16 path)"

    print("KERNEL_OK")
</pallas_src>

<mosaic_0001>
module attributes {stable_mosaic.version = 11 : i64} {
  func.func @_mlp_kernel(%arg0: i32, %arg1: memref<8x32xf32, #tpu.memory_space<vmem>>, %arg2: memref<32x128xf32, #tpu.memory_space<vmem>>, %arg3: memref<1x128xf32, #tpu.memory_space<vmem>>, %arg4: memref<128x256xf32, #tpu.memory_space<vmem>>, %arg5: memref<1x256xf32, #tpu.memory_space<vmem>>, %arg6: memref<256x16xf32, #tpu.memory_space<vmem>>, %arg7: memref<1x16xf32, #tpu.memory_space<vmem>>, %arg8: memref<8x16xf32, #tpu.memory_space<vmem>>) attributes {dimension_semantics = [#tpu.dimension_semantics<parallel>], iteration_bounds = array<i64: 2>, scalar_prefetch = 0 : i64, scratch_operands = 0 : i64, tpu.core_type = #tpu.core_type<tc>, window_params = [{transform_indices = @transform_0, window_bounds = array<i64: 8, 32>}, {pipeline_mode = #tpu.pipeline_mode<synchronous>, transform_indices = @transform_1, window_bounds = array<i64: 32, 128>}, {pipeline_mode = #tpu.pipeline_mode<synchronous>, transform_indices = @transform_2, window_bounds = array<i64: 1, 128>}, {pipeline_mode = #tpu.pipeline_mode<synchronous>, transform_indices = @transform_3, window_bounds = array<i64: 128, 256>}, {pipeline_mode = #tpu.pipeline_mode<synchronous>, transform_indices = @transform_4, window_bounds = array<i64: 1, 256>}, {pipeline_mode = #tpu.pipeline_mode<synchronous>, transform_indices = @transform_5, window_bounds = array<i64: 256, 16>}, {pipeline_mode = #tpu.pipeline_mode<synchronous>, transform_indices = @transform_6, window_bounds = array<i64: 1, 16>}, {transform_indices = @transform_7, window_bounds = array<i64: 8, 16>}]} {
    %c0 = arith.constant 0 : index
    %c0_0 = arith.constant 0 : index
    %0 = vector.load %arg1[%c0, %c0_0] : memref<8x32xf32, #tpu.memory_space<vmem>>, vector<8x32xf32>
    %c0_1 = arith.constant 0 : index
    %c0_2 = arith.constant 0 : index
    %1 = vector.load %arg2[%c0_1, %c0_2] : memref<32x128xf32, #tpu.memory_space<vmem>>, vector<32x128xf32>
    %cst = arith.constant dense<0.000000e+00> : vector<8x128xf32>
    %2 = tpu.matmul %0, %1, %cst {dimension_numbers = #tpu.dot_dimension_numbers<[1], [0], [0], [1], [0, 0, 1, 1], [], []>} : vector<8x32xf32>, vector<32x128xf32>, vector<8x128xf32> -> vector<8x128xf32>
    %c0_3 = arith.constant 0 : index
    %c0_4 = arith.constant 0 : index
    %3 = vector.load %arg3[%c0_3, %c0_4] : memref<1x128xf32, #tpu.memory_space<vmem>>, vector<1x128xf32>
    %4 = vector.broadcast %3 : vector<1x128xf32> to vector<8x128xf32>
    %5 = arith.addf %2, %4 : vector<8x128xf32>
    %cst_5 = arith.constant 0.000000e+00 : f32
    %6 = vector.broadcast %cst_5 : f32 to vector<8x128xf32>
    %7 = arith.maximumf %5, %6 : vector<8x128xf32>
    %c0_6 = arith.constant 0 : index
    %c0_7 = arith.constant 0 : index
    %8 = vector.load %arg4[%c0_6, %c0_7] : memref<128x256xf32, #tpu.memory_space<vmem>>, vector<128x256xf32>
    %cst_8 = arith.constant dense<0.000000e+00> : vector<8x256xf32>
    %9 = tpu.matmul %7, %8, %cst_8 {dimension_numbers = #tpu.dot_dimension_numbers<[1], [0], [0], [1], [0, 0, 1, 1], [], []>} : vector<8x128xf32>, vector<128x256xf32>, vector<8x256xf32> -> vector<8x256xf32>
    %c0_9 = arith.constant 0 : index
    %c0_10 = arith.constant 0 : index
    %10 = vector.load %arg5[%c0_9, %c0_10] : memref<1x256xf32, #tpu.memory_space<vmem>>, vector<1x256xf32>
    %11 = vector.broadcast %10 : vector<1x256xf32> to vector<8x256xf32>
    %12 = arith.addf %9, %11 : vector<8x256xf32>
    %cst_11 = arith.constant 0.000000e+00 : f32
    %13 = vector.broadcast %cst_11 : f32 to vector<8x256xf32>
    %14 = arith.maximumf %12, %13 : vector<8x256xf32>
    %c0_12 = arith.constant 0 : index
    %c0_13 = arith.constant 0 : index
    %15 = vector.load %arg6[%c0_12, %c0_13] : memref<256x16xf32, #tpu.memory_space<vmem>>, vector<256x16xf32>
    %cst_14 = arith.constant dense<0.000000e+00> : vector<8x16xf32>
    %16 = tpu.matmul %14, %15, %cst_14 {dimension_numbers = #tpu.dot_dimension_numbers<[1], [0], [0], [1], [0, 0, 1, 1], [], []>} : vector<8x256xf32>, vector<256x16xf32>, vector<8x16xf32> -> vector<8x16xf32>
    %c0_15 = arith.constant 0 : index
    %c0_16 = arith.constant 0 : index
    %17 = vector.load %arg7[%c0_15, %c0_16] : memref<1x16xf32, #tpu.memory_space<vmem>>, vector<1x16xf32>
    %18 = vector.broadcast %17 : vector<1x16xf32> to vector<8x16xf32>
    %19 = arith.addf %16, %18 : vector<8x16xf32>
    %c0_17 = arith.constant 0 : index
    %c0_18 = arith.constant 0 : index
    %20 = vector.load %arg8[%c0_17, %c0_18] : memref<8x16xf32, #tpu.memory_space<vmem>>, vector<8x16xf32>
    tpu.vector_store %arg8[%c0_17, %c0_18], %19 {strides = array<i32>} : memref<8x16xf32, #tpu.memory_space<vmem>>, vector<8x16xf32>,
    return
  }
  func.func @transform_0(%arg0: i32) -> (i32, i32) {
    %c0_i32 = arith.constant 0 : i32
    %c0_i32_0 = arith.constant 0 : i32
    return %arg0, %c0_i32 : i32, i32
  }
  func.func @transform_1(%arg0: i32) -> (i32, i32) {
    %c0_i32 = arith.constant 0 : i32
    %c0_i32_0 = arith.constant 0 : i32
    %c0_i32_1 = arith.constant 0 : i32
    return %c0_i32, %c0_i32_0 : i32, i32
  }
  func.func @transform_2(%arg0: i32) -> (i32, i32) {
    %c0_i32 = arith.constant 0 : i32
    %c0_i32_0 = arith.constant 0 : i32
    %c0_i32_1 = arith.constant 0 : i32
    return %c0_i32, %c0_i32_0 : i32, i32
  }
  func.func @transform_3(%arg0: i32) -> (i32, i32) {
    %c0_i32 = arith.constant 0 : i32
    %c0_i32_0 = arith.constant 0 : i32
    %c0_i32_1 = arith.constant 0 : i32
    return %c0_i32, %c0_i32_0 : i32, i32
  }
  func.func @transform_4(%arg0: i32) -> (i32, i32) {
    %c0_i32 = arith.constant 0 : i32
    %c0_i32_0 = arith.constant 0 : i32
    %c0_i32_1 = arith.constant 0 : i32
    return %c0_i32, %c0_i32_0 : i32, i32
  }
  func.func @transform_5(%arg0: i32) -> (i32, i32) {
    %c0_i32 = arith.constant 0 : i32
    %c0_i32_0 = arith.constant 0 : i32
    %c0_i32_1 = arith.constant 0 : i32
    return %c0_i32, %c0_i32_0 : i32, i32
  }
  func.func @transform_6(%arg0: i32) -> (i32, i32) {
    %c0_i32 = arith.constant 0 : i32
    %c0_i32_0 = arith.constant 0 : i32
    %c0_i32_1 = arith.constant 0 : i32
    return %c0_i32, %c0_i32_0 : i32, i32
  }
  func.func @transform_7(%arg0: i32) -> (i32, i32) {
    %c0_i32 = arith.constant 0 : i32
    %c0_i32_0 = arith.constant 0 : i32
    return %arg0, %c0_i32 : i32, i32
  }
}

</mosaic_0001>

<llo_original>
// kernel: net_forward.1
$region0: #{net_forward.1}
  #allocation0 [shape = 'u32[]', space=smem, size = 0x4, offset = 0x4, fixed_abs, tag = 'smem constant byte address 0x4 - core index']
  #allocation1 [shape = 'u32[144,128]{1,0:T(1,128)}', space=vmem, size = 0x12000, scoped, tag = 'internal scratch']
  %s0 = inlined_call_operand.vmem [shape: f32[16,32], index: 0, kind: input, shape index: {}]
  %s1 = inlined_call_operand.vmem [shape: f32[32,128], index: 1, kind: input, shape index: {}]
  %s2 = inlined_call_operand.vmem [shape: f32[1,128], index: 2, kind: input, shape index: {}]
  %s3 = inlined_call_operand.vmem [shape: f32[128,256], index: 3, kind: input, shape index: {}]
  %s4 = inlined_call_operand.vmem [shape: f32[1,256], index: 4, kind: input, shape index: {}]
  %s5 = inlined_call_operand.vmem [shape: f32[256,16], index: 5, kind: input, shape index: {}]
  %s6 = inlined_call_operand.vmem [shape: f32[1,16], index: 6, kind: input, shape index: {}]
  %s7 = inlined_call_operand.hbm [shape: f32[16,16], index: 7, kind: output, shape index: {}]
  %s8 = sld [smem:[#allocation0]]
  $region61: #{net_forward.1} parent=0
    _
  %s10 = ssub.s32 1, %s8
  %s11 = scalar_select 0, %s10, %s8
  $region1: #{net_forward.1} parent=0
    #allocation2 [shape = 'u8[8192]{0}', space=vmem, size = 0x2000, scoped, tag = 'output window, operand 0']
    #allocation3 [shape = 's32[2]{0}', space=sflag, size = 0x8, scoped, tag = 'scoped memory for net_forward.1']
    %12 = vsyncpa [#allocation3], 0
    %s13 = scalar_lea.sflag [#allocation3], 1
    %14 = vsyncpa %s13, 0
    loop: start=0, step=1, limit=4
    $region2: #{net_forward.1} parent=1 // loop_pre_header
      _
    $region3: #{net_forward.1} parent=1 // loop_header
      %s16 = sphi 0, %s20
      %p17 = scmp.ge.s32.totalorder %s16, 4
      %s26 = sphi 0, %s28
      %s29 = sphi 0, %s26
      %s30 = sphi 0, %s29
      %s46 = sphi 0, %s30
      %s50 = sphi 0, %s50
      %s52 = sphi 0, %s50
      %s53 = sphi 0, %s52
      %s67 = sphi 0, %s53
      %s71 = sphi 0, %s71
      %s73 = sphi 0, %s71
      %s74 = sphi 0, %s73
      %s88 = sphi 0, %s74
      %s92 = sphi 0, %s92
      %s94 = sphi 0, %s92
      %s95 = sphi 0, %s94
      %s109 = sphi 0, %s95
      %s113 = sphi 0, %s113
      %s115 = sphi 0, %s113
      %s116 = sphi 0, %s115
      %s130 = sphi 0, %s116
      %s134 = sphi 0, %s134
      %s136 = sphi 0, %s134
      %s137 = sphi 0, %s136
      %s151 = sphi 0, %s137
      %s155 = sphi 0, %s155
      %s157 = sphi 0, %s155
      %s158 = sphi 0, %s157
      %s172 = sphi 0, %s158
      %s178 = sphi 0, %s180
      %s181 = sphi 0, %s178
      %s182 = sphi 0, %s181
      %s198 = sphi 0, %s182
    $region4: #{net_forward.1} parent=1 // loop_header_branch
      %19 = sbr.rel (%p17) target = $region8
    $region5: #{net_forward.1} parent=1 // loop_body
      %s21 = ssub.s32 %s16, 1
      %s22 = ssub.s32 %s16, 2
      %s23 = sadd.s32 %s16, 1
      %s24 = ssub.s32 %s16, %s23
      %p25 = scmp.eq.s32.totalorder %s24, 0
      %s27 = sadd.s32 %s26, 1
      %s28 = scalar_select %p25, %s26, %s27
      %p31 = pneg %p25
      %p32 = scmp.eq.s32.totalorder %s16, 1
      %p33 = por %p31, %p32
      %p34 = scmp.ne.s32.totalorder %s26, %s29
      %p35 = scmp.eq.s32.totalorder %s16, 0
      %p36 = por %p34, %p35
      %p37 = scmp.ne.s32.totalorder %s26, %s29
      %p38 = scmp.eq.s32.totalorder %s21, 1
      %p39 = por %p37, %p38
      %p40 = scmp.ne.s32.totalorder %s29, %s30
      %p41 = scmp.eq.s32.totalorder %s21, 0
      %p42 = por %p40, %p41
      %p43 = scmp.ne.s32.totalorder %s29, %s30
      %p44 = scmp.eq.s32.totalorder %s22, 1
      %p45 = por %p43, %p44
      %p47 = scmp.ne.s32.totalorder %s30, %s46
      %p48 = scmp.eq.s32.totalorder %s22, 0
      %p49 = por %p47, %p48
      %s51 = sadd.s32 %s50, 1
      %p54 = scmp.eq.s32.totalorder %s16, 1
      %p55 = scmp.ne.s32.totalorder %s50, %s52
      %p56 = scmp.eq.s32.totalorder %s16, 0
      %p57 = por %p55, %p56
      %p58 = scmp.ne.s32.totalorder %s50, %s52
      %p59 = scmp.eq.s32.totalorder %s21, 1
      %p60 = por %p58, %p59
      %p61 = scmp.ne.s32.totalorder %s52, %s53
      %p62 = scmp.eq.s32.totalorder %s21, 0
      %p63 = por %p61, %p62
      %p64 = scmp.ne.s32.totalorder %s52, %s53
      %p65 = scmp.eq.s32.totalorder %s22, 1
      %p66 = por %p64, %p65
      %p68 = scmp.ne.s32.totalorder %s53, %s67
      %p69 = scmp.eq.s32.totalorder %s22, 0
      %p70 = por %p68, %p69
      %s72 = sadd.s32 %s71, 1
      %p75 = scmp.eq.s32.totalorder %s16, 1
      %p76 = scmp.ne.s32.totalorder %s71, %s73
      %p77 = scmp.eq.s32.totalorder %s16, 0
      %p78 = por %p76, %p77
      %p79 = scmp.ne.s32.totalorder %s71, %s73
      %p80 = scmp.eq.s32.totalorder %s21, 1
      %p81 = por %p79, %p80
      %p82 = scmp.ne.s32.totalorder %s73, %s74
      %p83 = scmp.eq.s32.totalorder %s21, 0
      %p84 = por %p82, %p83
      %p85 = scmp.ne.s32.totalorder %s73, %s74
      %p86 = scmp.eq.s32.totalorder %s22, 1
      %p87 = por %p85, %p86
      %p89 = scmp.ne.s32.totalorder %s74, %s88
      %p90 = scmp.eq.s32.totalorder %s22, 0
      %p91 = por %p89, %p90
      %s93 = sadd.s32 %s92, 1
      %p96 = scmp.eq.s32.totalorder %s16, 1
      %p97 = scmp.ne.s32.totalorder %s92, %s94
      %p98 = scmp.eq.s32.totalorder %s16, 0
      %p99 = por %p97, %p98
      %p100 = scmp.ne.s32.totalorder %s92, %s94
      %p101 = scmp.eq.s32.totalorder %s21, 1
      %p102 = por %p100, %p101
      %p103 = scmp.ne.s32.totalorder %s94, %s95
      %p104 = scmp.eq.s32.totalorder %s21, 0
      %p105 = por %p103, %p104
      %p106 = scmp.ne.s32.totalorder %s94, %s95
      %p107 = scmp.eq.s32.totalorder %s22, 1
      %p108 = por %p106, %p107
      %p110 = scmp.ne.s32.totalorder %s95, %s109
      %p111 = scmp.eq.s32.totalorder %s22, 0
      %p112 = por %p110, %p111
      %s114 = sadd.s32 %s113, 1
      %p117 = scmp.eq.s32.totalorder %s16, 1
      %p118 = scmp.ne.s32.totalorder %s113, %s115
      %p119 = scmp.eq.s32.totalorder %s16, 0
      %p120 = por %p118, %p119
      %p121 = scmp.ne.s32.totalorder %s113, %s115
      %p122 = scmp.eq.s32.totalorder %s21, 1
      %p123 = por %p121, %p122
      %p124 = scmp.ne.s32.totalorder %s115, %s116
      %p125 = scmp.eq.s32.totalorder %s21, 0
      %p126 = por %p124, %p125
      %p127 = scmp.ne.s32.totalorder %s115, %s116
      %p128 = scmp.eq.s32.totalorder %s22, 1
      %p129 = por %p127, %p128
      %p131 = scmp.ne.s32.totalorder %s116, %s130
      %p132 = scmp.eq.s32.totalorder %s22, 0
      %p133 = por %p131, %p132
      %s135 = sadd.s32 %s134, 1
      %p138 = scmp.eq.s32.totalorder %s16, 1
      %p139 = scmp.ne.s32.totalorder %s134, %s136
      %p140 = scmp.eq.s32.totalorder %s16, 0
      %p141 = por %p139, %p140
      %p142 = scmp.ne.s32.totalorder %s134, %s136
      %p143 = scmp.eq.s32.totalorder %s21, 1
      %p144 = por %p142, %p143
      %p145 = scmp.ne.s32.totalorder %s136, %s137
      %p146 = scmp.eq.s32.totalorder %s21, 0
      %p147 = por %p145, %p146
      %p148 = scmp.ne.s32.totalorder %s136, %s137
      %p149 = scmp.eq.s32.totalorder %s22, 1
      %p150 = por %p148, %p149
      %p152 = scmp.ne.s32.totalorder %s137, %s151
      %p153 = scmp.eq.s32.totalorder %s22, 0
      %p154 = por %p152, %p153
      %s156 = sadd.s32 %s155, 1
      %p159 = scmp.eq.s32.totalorder %s16, 1
      %p160 = scmp.ne.s32.totalorder %s155, %s157
      %p161 = scmp.eq.s32.totalorder %s16, 0
      %p162 = por %p160, %p161
      %p163 = scmp.ne.s32.totalorder %s155, %s157
      %p164 = scmp.eq.s32.totalorder %s21, 1
      %p165 = por %p163, %p164
      %p166 = scmp.ne.s32.totalorder %s157, %s158
      %p167 = scmp.eq.s32.totalorder %s21, 0
      %p168 = por %p166, %p167
      %p169 = scmp.ne.s32.totalorder %s157, %s158
      %p170 = scmp.eq.s32.totalorder %s22, 1
      %p171 = por %p169, %p170
      %p173 = scmp.ne.s32.totalorder %s158, %s172
      %p174 = scmp.eq.s32.totalorder %s22, 0
      %p175 = por %p173, %p174
      %s176 = ssub.s32 %s16, %s23
      %p177 = scmp.eq.s32.totalorder %s176, 0
      %s179 = sadd.s32 %s178, 1
      %s180 = scalar_select %p177, %s178, %s179
      %p183 = pneg %p177
      %p184 = scmp.eq.s32.totalorder %s16, 1
      %p185 = por %p183, %p184
      %p186 = scmp.ne.s32.totalorder %s178, %s181
      %p187 = scmp.eq.s32.totalorder %s16, 0
      %p188 = por %p186, %p187
      %p189 = scmp.ne.s32.totalorder %s178, %s181
      %p190 = scmp.eq.s32.totalorder %s21, 1
      %p191 = por %p189, %p190
      %p192 = scmp.ne.s32.totalorder %s181, %s182
      %p193 = scmp.eq.s32.totalorder %s21, 0
      %p194 = por %p192, %p193
      %p195 = scmp.ne.s32.totalorder %s181, %s182
      %p196 = scmp.eq.s32.totalorder %s22, 1
      %p197 = por %p195, %p196
      %p199 = scmp.ne.s32.totalorder %s182, %s198
      %p200 = scmp.eq.s32.totalorder %s22, 0
      %p201 = por %p199, %p200
      %p202 = scmp.le.s32.totalorder 1, %s16
      %p203 = scmp.lt.s32.totalorder %s16, 3
      %p204 = pnand %p202, %p203
      %p205 = pneg %p204
      // Predicated region
      $region9: #{net_forward.1} parent=5 // pred_check
        _
      $region10: #{net_forward.1} parent=5 // pred_check_branch
        %207 = sbr.rel (%p204) target = $region12
      $region11: #{net_forward.1} parent=5 // pred_region
        %s208 = ssub.s32 %s16, 1
        // Predicated region
        $region13: #{net_forward.1} parent=11 // pred_check
          %p209 = pneg %p63
        $region14: #{net_forward.1} parent=11 // pred_check_branch
          %211 = sbr.rel (%p209) target = $region16
        $region15: #{net_forward.1} parent=11 // pred_region
          _
        $region16: #{net_forward.1} parent=11 // pred_fallthru
          _
        // Predicated region
        $region17: #{net_forward.1} parent=11 // pred_check
          %p212 = pneg %p84
        $region18: #{net_forward.1} parent=11 // pred_check_branch
          %214 = sbr.rel (%p212) target = $region20
        $region19: #{net_forward.1} parent=11 // pred_region
          _
        $region20: #{net_forward.1} parent=11 // pred_fallthru
          _
        // Predicated region
        $region21: #{net_forward.1} parent=11 // pred_check
          %p215 = pneg %p105
        $region22: #{net_forward.1} parent=11 // pred_check_branch
          %217 = sbr.rel (%p215) target = $region24
        $region23: #{net_forward.1} parent=11 // pred_region
          _
        $region24: #{net_forward.1} parent=11 // pred_fallthru
          _
        // Predicated region
        $region25: #{net_forward.1} parent=11 // pred_check
          %p218 = pneg %p126
        $region26: #{net_forward.1} parent=11 // pred_check_branch
          %220 = sbr.rel (%p218) target = $region28
        $region27: #{net_forward.1} parent=11 // pred_region
          _
        $region28: #{net_forward.1} parent=11 // pred_fallthru
          _
        // Predicated region
        $region29: #{net_forward.1} parent=11 // pred_check
          %p221 = pneg %p147
        $region30: #{net_forward.1} parent=11 // pred_check_branch
          %223 = sbr.rel (%p221) target = $region32
        $region31: #{net_forward.1} parent=11 // pred_region
          _
        $region32: #{net_forward.1} parent=11 // pred_fallthru
          _
        // Predicated region
        $region33: #{net_forward.1} parent=11 // pred_check
          %p224 = pneg %p168
        $region34: #{net_forward.1} parent=11 // pred_check_branch
          %226 = sbr.rel (%p224) target = $region36
        $region35: #{net_forward.1} parent=11 // pred_region
          _
        $region36: #{net_forward.1} parent=11 // pred_fallthru
          _
      $region12: #{net_forward.1} parent=5 // pred_fallthru
        _
      %p227 = scmp.lt.s32.totalorder %s16, 2
      // Predicated region
      $region37: #{net_forward.1} parent=5 // pred_check
        %p228 = pneg %p227
      $region38: #{net_forward.1} parent=5 // pred_check_branch
        %230 = sbr.rel (%p228) target = $region40
      $region39: #{net_forward.1} parent=5 // pred_region
        // Predicated region
        $region41: #{net_forward.1} parent=39 // pred_check
          %p231 = pneg %p36
        $region42: #{net_forward.1} parent=39 // pred_check_branch
          %233 = sbr.rel (%p231) target = $region44
        $region43: #{net_forward.1} parent=39 // pred_region
          %p234 = scmp.lt.s32.totalorder %s16, 1
          %s235 = scalar_select %p234, %s16, 1
          %s236 = smul.addr %s235, 8
          %s237 = scalar_lea.vmem %s0, %s236
        $region44: #{net_forward.1} parent=39 // pred_fallthru
          _
      $region40: #{net_forward.1} parent=5 // pred_fallthru
        _
      %p238 = scmp.le.s32.totalorder 1, %s16
      %p239 = scmp.lt.s32.totalorder %s16, 3
      %p240 = pnand %p238, %p239
      %p241 = pneg %p240
      // Predicated region
      $region45: #{net_forward.1} parent=5 // pred_check
        _
      $region46: #{net_forward.1} parent=5 // pred_check_branch
        %243 = sbr.rel (%p240) target = $region48
      $region47: #{net_forward.1} parent=5 // pred_region
        %s244 = ssub.s32 %s16, 1
        %p245 = scmp.lt.s32.totalorder %s21, 1
        %s246 = scalar_select %p245, %s21, 1
        %s247 = smul.addr %s246, 8
        %s248 = scalar_lea.vmem %s0, %s247
        %p249 = pneg %p42
        %p250 = pneg %p39
        %p251 = pneg %p63
        %p252 = pneg %p60
        %p253 = pneg %p84
        %p254 = pneg %p81
        %p255 = pneg %p105
        %p256 = pneg %p102
        %p257 = pneg %p126
        %p258 = pneg %p123
        %p259 = pneg %p147
        %p260 = pneg %p144
        %p261 = pneg %p168
        %p262 = pneg %p165
        %p263 = pneg %p194
        %p264 = pneg %p191
        %s265 = sand.u32 %s181, 1
        %s266 = scalar_lea.sflag [#allocation3], %s265
        %s267 = sand.u32 %s181, 1
        %s268 = smul.addr %s267, 8
        %s269 = scalar_lea.vmem [#allocation2], %s268
        %p270 = scmp.lt.s32.totalorder %s21, 1
        %s271 = scalar_select %p270, %s21, 1
        %s272 = smul.addr %s271, 8
        %s273 = scalar_lea.vmem %s0, %s272
        %v274 = vld [vmem:[%s273] sm:$0xff]
        %v275 = vld [vmem:[%s1] sm:$0xff]
        %v276 = vld [vmem:[%s1 + $0x8] sm:$0xff]
        %v277 = vld [vmem:[%s1 + $0x10] sm:$0xff]
        %v278 = vld [vmem:[%s1 + $0x18] sm:$0xff]
        %v279 = vld [vmem:[%s2] sm:$0x1]
        %v281 = vlaneseq
        %v282 = vshrl.u32 %v281, 7
        %v283 = vsub.s32 0, %v282
        %v284 = vrot.slane %v279, %v283
        %vm286 = vcmask 261120
        %v288 = vsel %vm286, %v274, 0
        %290 = vmatprep.subr.mxu0 0.0
        %291 = vmatpush1.msra.mxu0 %v275
        %292 = vmatprep.subr.mxu0 0.0
        %293 = vmatpush1.msra.mxu0 %v276
        %294 = vmatprep.subr.mxu0 0.0
        %295 = vmatpush1.msra.mxu0 %v277
        %296 = vmatprep.subr.mxu0 0.0
        %297 = vmatpush1.msra.mxu0 %v278
        %298 = vmatprep.subr.mxu0 0.0
        %299 = vmatpush1.msra.mxu0 0.0
        %300 = vmatprep.subr.mxu0 0.0
        %301 = vmatpush1.msra.mxu0 0.0
        %302 = vmatprep.subr.mxu0 0.0
        %303 = vmatpush1.msra.mxu0 0.0
        %304 = vmatprep.subr.mxu0 0.0
        %305 = vmatpush1.msra.mxu0 0.0
        %306 = vmatprep.subr.mxu0 0.0
        %307 = vmatpush1.msra.mxu0 0.0
        %308 = vmatprep.subr.mxu0 0.0
        %309 = vmatpush1.msra.mxu0 0.0
        %310 = vmatprep.subr.mxu0 0.0
        %311 = vmatpush1.msra.mxu0 0.0
        %312 = vmatprep.subr.mxu0 0.0
        %313 = vmatpush1.msra.mxu0 0.0
        %314 = vmatprep.subr.mxu0 0.0
        %315 = vmatpush1.msra.mxu0 0.0
        %316 = vmatprep.subr.mxu0 0.0
        %317 = vmatpush1.msra.mxu0 0.0
        %318 = vmatprep.subr.mxu0 0.0
        %319 = vmatpush1.msra.mxu0 0.0
        %320 = vmatprep.subr.mxu0 0.0
        %321 = vmatpush1.msra.mxu0 0.0
        %322 = vmatprep.subr.mxu0 0.0
        %323 = vmatpush1.msra.mxu0 0.0
        %324 = vmatprep.subr.mxu0 0.0
        %325 = vmatpush1.msra.mxu0 0.0
        %326 = vmatprep.subr.mxu0 0.0
        %327 = vmatpush1.msra.mxu0 0.0
        %328 = vmatprep.subr.mxu0 0.0
        %329 = vmatpush1.msra.mxu0 0.0
        %330 = vmatprep.subr.mxu0 0.0
        %331 = vmatpush1.msra.mxu0 0.0
        %332 = vmatprep.subr.mxu0 0.0
        %333 = vmatpush1.msra.mxu0 0.0
        %334 = vmatprep.subr.mxu0 0.0
        %335 = vmatpush1.msra.mxu0 0.0
        %336 = vmatprep.subr.mxu0 0.0
        %337 = vmatpush1.msra.mxu0 0.0
        %338 = vmatprep.subr.mxu0 0.0
        %339 = vmatpush1.msra.mxu0 0.0
        %340 = vmatprep.subr.mxu0 0.0
        %341 = vmatpush1.msra.mxu0 0.0
        %342 = vmatprep.subr.mxu0 0.0
        %343 = vmatpush1.msra.mxu0 0.0
        %344 = vmatprep.subr.mxu0 0.0
        %345 = vmatpush1.msra.mxu0 0.0
        %346 = vmatprep.subr.mxu0 0.0
        %347 = vmatpush1.msra.mxu0 0.0
        %348 = vmatprep.subr.mxu0 0.0
        %349 = vmatpush1.msra.mxu0 0.0
        %350 = vmatprep.subr.mxu0 0.0
        %351 = vmatpush1.msra.mxu0 0.0
        %352 = vmatprep.subr.mxu0 0.0
        %353 = vmatpush1.msra.mxu0 0.0
        %354 = vmatprep.mubr.f32.mxu0 0.0
        %355 = vmatmul.mubr.f32.gmra.mrb[0].mxu0 %v288
        %v356 = vpop.f32.mrb[0].mxu0
        %v357 = vadd.f32 %v284, %v356
        %v358 = vpop.f32.mrb[0].mxu0
        %359 = vdwg.mxu0
        %v360 = vmax.f32 %v357, 0.0
        %v361 = vld [vmem:[%s3] sm:$0xff]
        %v362 = vld [vmem:[%s3 + $0x8] sm:$0xff]
        %v363 = vld [vmem:[%s3 + $0x10] sm:$0xff]
        %v364 = vld [vmem:[%s3 + $0x18] sm:$0xff]
        %v365 = vld [vmem:[%s3 + $0x20] sm:$0xff]
        %v366 = vld [vmem:[%s3 + $0x28] sm:$0xff]
        %v367 = vld [vmem:[%s3 + $0x30] sm:$0xff]
        %v368 = vld [vmem:[%s3 + $0x38] sm:$0xff]
        %v369 = vld [vmem:[%s3 + $0x40] sm:$0xff]
        %v370 = vld [vmem:[%s3 + $0x48] sm:$0xff]
        %v371 = vld [vmem:[%s3 + $0x50] sm:$0xff]
        %v372 = vld [vmem:[%s3 + $0x58] sm:$0xff]
        %v373 = vld [vmem:[%s3 + $0x60] sm:$0xff]
        %v374 = vld [vmem:[%s3 + $0x68] sm:$0xff]
        %v375 = vld [vmem:[%s3 + $0x70] sm:$0xff]
        %v376 = vld [vmem:[%s3 + $0x78] sm:$0xff]
        %v377 = vld [vmem:[%s3 + $0x80] sm:$0xff]
        %v378 = vld [vmem:[%s3 + $0x88] sm:$0xff]
        %v379 = vld [vmem:[%s3 + $0x90] sm:$0xff]
        %v380 = vld [vmem:[%s3 + $0x98] sm:$0xff]
        %v381 = vld [vmem:[%s3 + $0xa0] sm:$0xff]
        %v382 = vld [vmem:[%s3 + $0xa8] sm:$0xff]
        %v383 = vld [vmem:[%s3 + $0xb0] sm:$0xff]
        %v384 = vld [vmem:[%s3 + $0xb8] sm:$0xff]
        %v385 = vld [vmem:[%s3 + $0xc0] sm:$0xff]
        %v386 = vld [vmem:[%s3 + $0xc8] sm:$0xff]
        %v387 = vld [vmem:[%s3 + $0xd0] sm:$0xff]
        %v388 = vld [vmem:[%s3 + $0xd8] sm:$0xff]
        %v389 = vld [vmem:[%s3 + $0xe0] sm:$0xff]
        %v390 = vld [vmem:[%s3 + $0xe8] sm:$0xff]
        %v391 = vld [vmem:[%s3 + $0xf0] sm:$0xff]
        %v392 = vld [vmem:[%s3 + $0xf8] sm:$0xff]
        %v393 = vld [vmem:[%s4] sm:$0x3]
        %v395 = vlaneseq
        %v396 = vshrl.u32 %v395, 7
        %v397 = vsub.s32 0, %v396
        %v398 = vrot.slane %v393, %v397
        %v399 = vlaneseq
        %v400 = vshrl.u32 %v399, 7
        %v401 = vsub.s32 1, %v400
        %v402 = vrot.slane %v393, %v401
        %405 = vmatprep.subr.mxu0 %v362
        %406 = vmatpush1.msra.mxu0 %v361
        %407 = vmatprep.subr.mxu0 %v364
        %408 = vmatpush1.msra.mxu0 %v363
        %409 = vmatprep.subr.mxu0 %v366
        %410 = vmatpush1.msra.mxu0 %v365
        %411 = vmatprep.subr.mxu0 %v368
        %412 = vmatpush1.msra.mxu0 %v367
        %413 = vmatprep.subr.mxu0 %v370
        %414 = vmatpush1.msra.mxu0 %v369
        %415 = vmatprep.subr.mxu0 %v372
        %416 = vmatpush1.msra.mxu0 %v371
        %417 = vmatprep.subr.mxu0 %v374
        %418 = vmatpush1.msra.mxu0 %v373
        %419 = vmatprep.subr.mxu0 %v376
        %420 = vmatpush1.msra.mxu0 %v375
        %421 = vmatprep.subr.mxu0 %v378
        %422 = vmatpush1.msra.mxu0 %v377
        %423 = vmatprep.subr.mxu0 %v380
        %424 = vmatpush1.msra.mxu0 %v379
        %425 = vmatprep.subr.mxu0 %v382
        %426 = vmatpush1.msra.mxu0 %v381
        %427 = vmatprep.subr.mxu0 %v384
        %428 = vmatpush1.msra.mxu0 %v383
        %429 = vmatprep.subr.mxu0 %v386
        %430 = vmatpush1.msra.mxu0 %v385
        %431 = vmatprep.subr.mxu0 %v388
        %432 = vmatpush1.msra.mxu0 %v387
        %433 = vmatprep.subr.mxu0 %v390
        %434 = vmatpush1.msra.mxu0 %v389
        %435 = vmatprep.subr.mxu0 %v392
        %436 = vmatpush1.msra.mxu0 %v391
        %437 = vmatprep.subr.mxu0 0.0
        %438 = vmatpush1.msra.mxu0 0.0
        %439 = vmatprep.subr.mxu0 0.0
        %440 = vmatpush1.msra.mxu0 0.0
        %441 = vmatprep.subr.mxu0 0.0
        %442 = vmatpush1.msra.mxu0 0.0
        %443 = vmatprep.subr.mxu0 0.0
        %444 = vmatpush1.msra.mxu0 0.0
        %445 = vmatprep.subr.mxu0 0.0
        %446 = vmatpush1.msra.mxu0 0.0
        %447 = vmatprep.subr.mxu0 0.0
        %448 = vmatpush1.msra.mxu0 0.0
        %449 = vmatprep.subr.mxu0 0.0
        %450 = vmatpush1.msra.mxu0 0.0
        %451 = vmatprep.subr.mxu0 0.0
        %452 = vmatpush1.msra.mxu0 0.0
        %453 = vmatprep.subr.mxu0 0.0
        %454 = vmatpush1.msra.mxu0 0.0
        %455 = vmatprep.subr.mxu0 0.0
        %456 = vmatpush1.msra.mxu0 0.0
        %457 = vmatprep.subr.mxu0 0.0
        %458 = vmatpush1.msra.mxu0 0.0
        %459 = vmatprep.subr.mxu0 0.0
        %460 = vmatpush1.msra.mxu0 0.0
        %461 = vmatprep.subr.mxu0 0.0
        %462 = vmatpush1.msra.mxu0 0.0
        %463 = vmatprep.subr.mxu0 0.0
        %464 = vmatpush1.msra.mxu0 0.0
        %465 = vmatprep.subr.mxu0 0.0
        %466 = vmatpush1.msra.mxu0 0.0
        %467 = vmatprep.subr.mxu0 0.0
        %468 = vmatpush1.msra.mxu0 0.0
        %469 = vmatprep.mubr.f32.mxu0 0.0
        %470 = vmatmul.mubr.f32.gmra.mrb[0].mxu0 %v360
        %v471 = vpop.f32.mrb[0].mxu0
        %v472 = vadd.f32 %v398, %v471
        %v473 = vpop.f32.mrb[0].mxu0
        %v474 = vadd.f32 %v402, %v473
        %475 = vdwg.mxu0
        %v476 = vmax.f32 %v472, 0.0
        %v477 = vmax.f32 %v474, 0.0
        %v478 = vld [vmem:[%s5] sm:$0xff]
        %v479 = vld [vmem:[%s5 + $0x8] sm:$0xff]
        %v480 = vld [vmem:[%s5 + $0x10] sm:$0xff]
        %v481 = vld [vmem:[%s5 + $0x18] sm:$0xff]
        %v482 = vld [vmem:[%s5 + $0x20] sm:$0xff]
        %v483 = vld [vmem:[%s5 + $0x28] sm:$0xff]
        %v484 = vld [vmem:[%s5 + $0x30] sm:$0xff]
        %v485 = vld [vmem:[%s5 + $0x38] sm:$0xff]
        %v486 = vld [vmem:[%s5 + $0x40] sm:$0xff]
        %v487 = vld [vmem:[%s5 + $0x48] sm:$0xff]
        %v488 = vld [vmem:[%s5 + $0x50] sm:$0xff]
        %v489 = vld [vmem:[%s5 + $0x58] sm:$0xff]
        %v490 = vld [vmem:[%s5 + $0x60] sm:$0xff]
        %v491 = vld [vmem:[%s5 + $0x68] sm:$0xff]
        %v492 = vld [vmem:[%s5 + $0x70] sm:$0xff]
        %v493 = vld [vmem:[%s5 + $0x78] sm:$0xff]
        %v494 = vld [vmem:[%s5 + $0x80] sm:$0xff]
        %v495 = vld [vmem:[%s5 + $0x88] sm:$0xff]
        %v496 = vld [vmem:[%s5 + $0x90] sm:$0xff]
        %v497 = vld [vmem:[%s5 + $0x98] sm:$0xff]
        %v498 = vld [vmem:[%s5 + $0xa0] sm:$0xff]
        %v499 = vld [vmem:[%s5 + $0xa8] sm:$0xff]
        %v500 = vld [vmem:[%s5 + $0xb0] sm:$0xff]
        %v501 = vld [vmem:[%s5 + $0xb8] sm:$0xff]
        %v502 = vld [vmem:[%s5 + $0xc0] sm:$0xff]
        %v503 = vld [vmem:[%s5 + $0xc8] sm:$0xff]
        %v504 = vld [vmem:[%s5 + $0xd0] sm:$0xff]
        %v505 = vld [vmem:[%s5 + $0xd8] sm:$0xff]
        %v506 = vld [vmem:[%s5 + $0xe0] sm:$0xff]
        %v507 = vld [vmem:[%s5 + $0xe8] sm:$0xff]
        %v508 = vld [vmem:[%s5 + $0xf0] sm:$0xff]
        %v509 = vld [vmem:[%s5 + $0xf8] sm:$0xff]
        %v510 = vld [vmem:[%s6] sm:$0x1]
        %v512 = vlaneseq
        %v513 = vshrl.u32 %v512, 7
        %v514 = vsub.s32 0, %v513
        %v515 = vrot.slane %v510, %v514
        %517 = vmatprep.subr.mxu0 0.0
        %518 = vmatpush1.msra.mxu0 %v478
        %519 = vmatprep.subr.mxu0 0.0
        %520 = vmatpush1.msra.mxu0 %v479
        %521 = vmatprep.subr.mxu0 0.0
        %522 = vmatpush1.msra.mxu0 %v480
        %523 = vmatprep.subr.mxu0 0.0
        %524 = vmatpush1.msra.mxu0 %v481
        %525 = vmatprep.subr.mxu0 0.0
        %526 = vmatpush1.msra.mxu0 %v482
        %527 = vmatprep.subr.mxu0 0.0
        %528 = vmatpush1.msra.mxu0 %v483
        %529 = vmatprep.subr.mxu0 0.0
        %530 = vmatpush1.msra.mxu0 %v484
        %531 = vmatprep.subr.mxu0 0.0
        %532 = vmatpush1.msra.mxu0 %v485
        %533 = vmatprep.subr.mxu0 0.0
        %534 = vmatpush1.msra.mxu0 %v486
        %535 = vmatprep.subr.mxu0 0.0
        %536 = vmatpush1.msra.mxu0 %v487
        %537 = vmatprep.subr.mxu0 0.0
        %538 = vmatpush1.msra.mxu0 %v488
        %539 = vmatprep.subr.mxu0 0.0
        %540 = vmatpush1.msra.mxu0 %v489
        %541 = vmatprep.subr.mxu0 0.0
        %542 = vmatpush1.msra.mxu0 %v490
        %543 = vmatprep.subr.mxu0 0.0
        %544 = vmatpush1.msra.mxu0 %v491
        %545 = vmatprep.subr.mxu0 0.0
        %546 = vmatpush1.msra.mxu0 %v492
        %547 = vmatprep.subr.mxu0 0.0
        %548 = vmatpush1.msra.mxu0 %v493
        %549 = vmatprep.subr.mxu0 0.0
        %550 = vmatpush1.msra.mxu0 %v494
        %551 = vmatprep.subr.mxu0 0.0
        %552 = vmatpush1.msra.mxu0 %v495
        %553 = vmatprep.subr.mxu0 0.0
        %554 = vmatpush1.msra.mxu0 %v496
        %555 = vmatprep.subr.mxu0 0.0
        %556 = vmatpush1.msra.mxu0 %v497
        %557 = vmatprep.subr.mxu0 0.0
        %558 = vmatpush1.msra.mxu0 %v498
        %559 = vmatprep.subr.mxu0 0.0
        %560 = vmatpush1.msra.mxu0 %v499
        %561 = vmatprep.subr.mxu0 0.0
        %562 = vmatpush1.msra.mxu0 %v500
        %563 = vmatprep.subr.mxu0 0.0
        %564 = vmatpush1.msra.mxu0 %v501
        %565 = vmatprep.subr.mxu0 0.0
        %566 = vmatpush1.msra.mxu0 %v502
        %567 = vmatprep.subr.mxu0 0.0
        %568 = vmatpush1.msra.mxu0 %v503
        %569 = vmatprep.subr.mxu0 0.0
        %570 = vmatpush1.msra.mxu0 %v504
        %571 = vmatprep.subr.mxu0 0.0
        %572 = vmatpush1.msra.mxu0 %v505
        %573 = vmatprep.subr.mxu0 0.0
        %574 = vmatpush1.msra.mxu0 %v506
        %575 = vmatprep.subr.mxu0 0.0
        %576 = vmatpush1.msra.mxu0 %v507
        %577 = vmatprep.subr.mxu0 0.0
        %578 = vmatpush1.msra.mxu0 %v508
        %579 = vmatprep.subr.mxu0 0.0
        %580 = vmatpush1.msra.mxu0 %v509
        %581 = vmatprep.mubr.f32.mxu0 %v477
        %582 = vmatmul.mubr.f32.gmra.mrb[0].mxu0 %v476
        %v583 = vpop.f32.mrb[0].mxu0
        %v584 = vadd.f32 %v515, %v583
        %v585 = vpop.f32.mrb[0].mxu0
        %586 = vdwg.mxu0
        %vm587 = vcmask 130048
        %588 = vst.msk [vmem:[%s269] sm:$0xff] %vm587, %v584
        %s589 = sand.u32 %s181, 1
        %s590 = scalar_lea.sflag [#allocation3], %s589
        %s591 = sand.u32 %s181, 1
        %s592 = smul.addr %s591, 8
        %s593 = scalar_lea.vmem [#allocation2], %s592
        // Predicated region
        $region49: #{net_forward.1} parent=47 // pred_check
          %p594 = pneg %p191
        $region50: #{net_forward.1} parent=47 // pred_check_branch
          %596 = sbr.rel (%p594) target = $region52
        $region51: #{net_forward.1} parent=47 // pred_region
          %s598 = ssub.s32 128, 128
          %599 = vsyncadd %s590, %s598
          %s600 = smul.addr %s21, 128
          %s601 = scalar_lea.hbm %s7, %s600
          %s603 = sshll.u32 %s593, 4
          %s604 = int_to_ptr.vmem [resolvable:$true] %s603
          %606 = dma.vmem_to_hbm [thread:$0]  %s604, 128, %s601, %s590
        $region52: #{net_forward.1} parent=47 // pred_fallthru
          _
      $region48: #{net_forward.1} parent=5 // pred_fallthru
        _
      %p607 = scmp.le.s32.totalorder 2, %s16
      // Predicated region
      $region53: #{net_forward.1} parent=5 // pred_check
        %p608 = pneg %p607
      $region54: #{net_forward.1} parent=5 // pred_check_branch
        %610 = sbr.rel (%p608) target = $region56
      $region55: #{net_forward.1} parent=5 // pred_region
        %s611 = ssub.s32 %s16, 2
        // Predicated region
        $region57: #{net_forward.1} parent=55 // pred_check
          %p612 = pneg %p197
        $region58: #{net_forward.1} parent=55 // pred_check_branch
          %614 = sbr.rel (%p612) target = $region60
        $region59: #{net_forward.1} parent=55 // pred_region
          %s615 = sand.u32 %s182, 1
          %s616 = scalar_lea.sflag [#allocation3], %s615
          %s617 = sand.u32 %s182, 1
          %s618 = smul.addr %s617, 8
          %s619 = scalar_lea.vmem [#allocation2], %s618
          %620 = dma.done %s616, 128
        $region60: #{net_forward.1} parent=55 // pred_fallthru
          _
      $region56: #{net_forward.1} parent=5 // pred_fallthru
        _
    $region6: #{net_forward.1} parent=1 // loop_footer
      %s20 = sadd.s32 1, %s16
    $region7: #{net_forward.1} parent=1 // loop_footer_branch
      %15 = sbr.rel target = $region3
    $region8: #{net_forward.1} parent=1 // loop_exit
      _
    %621 = vsyncpa [#allocation3], 1
    %s622 = scalar_lea.sflag [#allocation3], 1
    %623 = vsyncpa %s622, 1

</llo_original>
